<compile_context>
chip_gen: v7x
topology: tpu7x:2x2x1
jax: 0.10.0
libtpu: 0.0.40
codegen_flags: <defaults>
</compile_context>

<pallas_src>
import jax
import jax.numpy as jnp
from jax.experimental import pallas as pl
from jax.experimental.pallas import tpu as pltpu

IN_DIM = 28 * 28            # 784 (equal to full array dim -> legal block)
HID_DIM = 128
OUT_DIM = 10
OUT_PAD = 128               # lane-dense output columns (sliced to 10 outside)
DEFAULT_BATCH_TILE = 1024   # rows of x per grid step (sweep 512-2048)


def _round_up(n, m):
    return ((n + m - 1) // m) * m


def _mlp_kernel(x_ref, w1_ref, b1_ref, w2_ref, b2_ref, o_ref):
    # Cast activations to bf16 in-kernel (x arrives as f32 from HBM once).
    x = x_ref[...].astype(jnp.bfloat16)
    # fc1: (TB, 784)bf16 @ (784, 128)bf16 -> f32 accumulation on MXU
    h = jnp.dot(x, w1_ref[...], preferred_element_type=jnp.float32)
    h = jnp.maximum(h + b1_ref[...], 0.0)                # bias + ReLU in f32
    # fc2: (TB, 128)bf16 @ (128, 128)bf16 -> f32 accumulation
    y = jnp.dot(h.astype(jnp.bfloat16), w2_ref[...],
                preferred_element_type=jnp.float32)
    o_ref[...] = (y + b2_ref[...]).astype(o_ref.dtype)   # bf16 writeback


def prepare_params(w1, b1, w2, b2):
    """One-time cast/pad of parameters.

    w1: (784, 128), b1: (128,), w2: (128, 10), b2: (10,)   [y = x @ W + b]
    Returns bf16 weights (784,128)/(128,128) and f32 biases (1,128)/(1,128);
    zero padding of W2/b2 columns never changes the sliced [:, :10] result.
    """
    w1p = w1.astype(jnp.bfloat16)                                   # (784,128)
    b1p = b1.reshape(1, HID_DIM).astype(jnp.float32)                # (1,128)

    w2p = jnp.zeros((HID_DIM, OUT_PAD), jnp.bfloat16)
    w2p = w2p.at[:, :OUT_DIM].set(w2.astype(jnp.bfloat16))          # (128,128)
    b2p = jnp.zeros((1, OUT_PAD), jnp.float32)
    b2p = b2p.at[:, :OUT_DIM].set(b2.reshape(1, OUT_DIM).astype(jnp.float32))
    return w1p, b1p, w2p, b2p


def mlp_forward(x, w1p, b1p, w2p, b2p, *, batch_tile=DEFAULT_BATCH_TILE):
    """x: any shape whose trailing dims flatten to 784 (e.g. (B,1,28,28)).

    Streams x (f32) directly into the fused MLP kernel; no batch/K padding is
    materialized.  Returns (B, 10) float32 logits.
    """
    x2d = x.reshape(-1, IN_DIM)
    B = x2d.shape[0]

    # Tile selection: big tiles for throughput, but never a 1-step grid for
    # multi-row batches (v7x has 2 TensorCores sharing the "parallel" axis).
    tile = min(batch_tile, _round_up(B, 8))
    if B > 8 and pl.cdiv(B, tile) < 2:
        tile = max(8, _round_up(pl.cdiv(B, 2), 8))
    grid = (pl.cdiv(B, tile),)   # ragged last block is masked by Pallas

    out = pl.pallas_call(
        _mlp_kernel,
        out_shape=jax.ShapeDtypeStruct((B, OUT_PAD), jnp.bfloat16),
        grid_spec=pltpu.PrefetchScalarGridSpec(
            num_scalar_prefetch=0,
            grid=grid,
            in_specs=[
                # activations: tiled along batch, full 784-wide rows, f32
                pl.BlockSpec((tile, IN_DIM), lambda i: (i, 0)),
                # weights / biases: constant block index -> VMEM-resident,
                # no per-step re-fetch.
                pl.BlockSpec((IN_DIM, HID_DIM), lambda i: (0, 0)),
                pl.BlockSpec((1, HID_DIM), lambda i: (0, 0)),
                pl.BlockSpec((HID_DIM, OUT_PAD), lambda i: (0, 0)),
                pl.BlockSpec((1, OUT_PAD), lambda i: (0, 0)),
            ],
            out_specs=pl.BlockSpec((tile, OUT_PAD), lambda i: (i, 0)),
        ),
        compiler_params=pltpu.CompilerParams(
            dimension_semantics=("parallel",),     # megacore / 2-TC sharding
            vmem_limit_bytes=32 * 1024 * 1024,     # <8 MiB used at tile=1024
        ),
    )(x2d, w1p, b1p, w2p, b2p)

    # Slice off padded columns (and any garbage from the ragged last block
    # never appears: out has exactly B rows), cast tiny result back to f32.
    return out[:, :OUT_DIM].astype(jnp.float32)


def init_params(key):
    """Deterministic init mimicking nn.Linear's uniform(-1/sqrt(fan_in), ...)."""
    k1, k2, k3, k4 = jax.random.split(key, 4)
    bound1 = 1.0 / jnp.sqrt(IN_DIM)
    bound2 = 1.0 / jnp.sqrt(HID_DIM)
    w1 = jax.random.uniform(k1, (IN_DIM, HID_DIM), jnp.float32, -bound1, bound1)
    b1 = jax.random.uniform(k2, (HID_DIM,), jnp.float32, -bound1, bound1)
    w2 = jax.random.uniform(k3, (HID_DIM, OUT_DIM), jnp.float32, -bound2, bound2)
    b2 = jax.random.uniform(k4, (OUT_DIM,), jnp.float32, -bound2, bound2)
    return w1, b1, w2, b2


if __name__ == "__main__":
    key = jax.random.PRNGKey(0)
    kx, kp = jax.random.split(key)

    # Small, deliberately ragged batch: exercises the un-padded cdiv grid
    # (B=37 -> 2 grid steps of 24 rows, last block partially masked).
    B = 37
    x = jax.random.normal(kx, (B, 1, 28, 28), dtype=jnp.float32)
    w1, b1, w2, b2 = init_params(kp)

    params = prepare_params(w1, b1, w2, b2)
    out = jax.block_until_ready(mlp_forward(x, *params))

    # reference in plain f32 JAX (kernel uses bf16 matmuls + bf16 output)
    x2d = x.reshape(-1, IN_DIM)
    ref = jnp.maximum(x2d @ w1 + b1, 0.0) @ w2 + b2
    assert out.shape == (B, OUT_DIM)
    assert jnp.allclose(out, ref, atol=5e-2, rtol=5e-2), float(
        jnp.max(jnp.abs(out - ref)))

    print("KERNEL_OK")
</pallas_src>

<mosaic_0001>
module attributes {stable_mosaic.version = 11 : i64} {
  func.func @_mlp_kernel(%arg0: i32, %arg1: memref<24x784xf32, #tpu.memory_space<vmem>>, %arg2: memref<784x128xbf16, #tpu.memory_space<vmem>>, %arg3: memref<1x128xf32, #tpu.memory_space<vmem>>, %arg4: memref<128x128xbf16, #tpu.memory_space<vmem>>, %arg5: memref<1x128xf32, #tpu.memory_space<vmem>>, %arg6: memref<24x128xbf16, #tpu.memory_space<vmem>>) attributes {dimension_semantics = [#tpu.dimension_semantics<parallel>], iteration_bounds = array<i64: 2>, scalar_prefetch = 0 : i64, scratch_operands = 0 : i64, tpu.core_type = #tpu.core_type<tc>, window_params = [{transform_indices = @transform_0, window_bounds = array<i64: 24, 784>}, {pipeline_mode = #tpu.pipeline_mode<synchronous>, transform_indices = @transform_1, window_bounds = array<i64: 784, 128>}, {pipeline_mode = #tpu.pipeline_mode<synchronous>, transform_indices = @transform_2, window_bounds = array<i64: 1, 128>}, {pipeline_mode = #tpu.pipeline_mode<synchronous>, transform_indices = @transform_3, window_bounds = array<i64: 128, 128>}, {pipeline_mode = #tpu.pipeline_mode<synchronous>, transform_indices = @transform_4, window_bounds = array<i64: 1, 128>}, {transform_indices = @transform_5, window_bounds = array<i64: 24, 128>}]} {
    %c0 = arith.constant 0 : index
    %c0_0 = arith.constant 0 : index
    %0 = vector.load %arg1[%c0, %c0_0] : memref<24x784xf32, #tpu.memory_space<vmem>>, vector<24x784xf32>
    %1 = arith.truncf %0 : vector<24x784xf32> to vector<24x784xbf16>
    %c0_1 = arith.constant 0 : index
    %c0_2 = arith.constant 0 : index
    %2 = vector.load %arg2[%c0_1, %c0_2] : memref<784x128xbf16, #tpu.memory_space<vmem>>, vector<784x128xbf16>
    %cst = arith.constant dense<0.000000e+00> : vector<24x128xf32>
    %3 = tpu.matmul %1, %2, %cst {dimension_numbers = #tpu.dot_dimension_numbers<[1], [0], [0], [1], [0, 0, 1, 1], [], []>} : vector<24x784xbf16>, vector<784x128xbf16>, vector<24x128xf32> -> vector<24x128xf32>
    %c0_3 = arith.constant 0 : index
    %c0_4 = arith.constant 0 : index
    %4 = vector.load %arg3[%c0_3, %c0_4] : memref<1x128xf32, #tpu.memory_space<vmem>>, vector<1x128xf32>
    %5 = vector.broadcast %4 : vector<1x128xf32> to vector<24x128xf32>
    %6 = arith.addf %3, %5 : vector<24x128xf32>
    %cst_5 = arith.constant 0.000000e+00 : f32
    %7 = vector.broadcast %cst_5 : f32 to vector<24x128xf32>
    %8 = arith.maximumf %6, %7 : vector<24x128xf32>
    %9 = arith.truncf %8 : vector<24x128xf32> to vector<24x128xbf16>
    %c0_6 = arith.constant 0 : index
    %c0_7 = arith.constant 0 : index
    %10 = vector.load %arg4[%c0_6, %c0_7] : memref<128x128xbf16, #tpu.memory_space<vmem>>, vector<128x128xbf16>
    %cst_8 = arith.constant dense<0.000000e+00> : vector<24x128xf32>
    %11 = tpu.matmul %9, %10, %cst_8 {dimension_numbers = #tpu.dot_dimension_numbers<[1], [0], [0], [1], [0, 0, 1, 1], [], []>} : vector<24x128xbf16>, vector<128x128xbf16>, vector<24x128xf32> -> vector<24x128xf32>
    %c0_9 = arith.constant 0 : index
    %c0_10 = arith.constant 0 : index
    %12 = vector.load %arg5[%c0_9, %c0_10] : memref<1x128xf32, #tpu.memory_space<vmem>>, vector<1x128xf32>
    %13 = vector.broadcast %12 : vector<1x128xf32> to vector<24x128xf32>
    %14 = arith.addf %11, %13 : vector<24x128xf32>
    %15 = arith.truncf %14 : vector<24x128xf32> to vector<24x128xbf16>
    %c0_11 = arith.constant 0 : index
    %c0_12 = arith.constant 0 : index
    %16 = vector.load %arg6[%c0_11, %c0_12] : memref<24x128xbf16, #tpu.memory_space<vmem>>, vector<24x128xbf16>
    tpu.vector_store %arg6[%c0_11, %c0_12], %15 {strides = array<i32>} : memref<24x128xbf16, #tpu.memory_space<vmem>>, vector<24x128xbf16>,
    return
  }
  func.func @transform_0(%arg0: i32) -> (i32, i32) {
    %c0_i32 = arith.constant 0 : i32
    %c0_i32_0 = arith.constant 0 : i32
    return %arg0, %c0_i32 : i32, i32
  }
  func.func @transform_1(%arg0: i32) -> (i32, i32) {
    %c0_i32 = arith.constant 0 : i32
    %c0_i32_0 = arith.constant 0 : i32
    %c0_i32_1 = arith.constant 0 : i32
    return %c0_i32, %c0_i32_0 : i32, i32
  }
  func.func @transform_2(%arg0: i32) -> (i32, i32) {
    %c0_i32 = arith.constant 0 : i32
    %c0_i32_0 = arith.constant 0 : i32
    %c0_i32_1 = arith.constant 0 : i32
    return %c0_i32, %c0_i32_0 : i32, i32
  }
  func.func @transform_3(%arg0: i32) -> (i32, i32) {
    %c0_i32 = arith.constant 0 : i32
    %c0_i32_0 = arith.constant 0 : i32
    %c0_i32_1 = arith.constant 0 : i32
    return %c0_i32, %c0_i32_0 : i32, i32
  }
  func.func @transform_4(%arg0: i32) -> (i32, i32) {
    %c0_i32 = arith.constant 0 : i32
    %c0_i32_0 = arith.constant 0 : i32
    %c0_i32_1 = arith.constant 0 : i32
    return %c0_i32, %c0_i32_0 : i32, i32
  }
  func.func @transform_5(%arg0: i32) -> (i32, i32) {
    %c0_i32 = arith.constant 0 : i32
    %c0_i32_0 = arith.constant 0 : i32
    return %arg0, %c0_i32 : i32, i32
  }
}

</mosaic_0001>

<llo_original>
// kernel: tpu_custom_call.1
$region0: #{tpu_custom_call.1}
  #allocation0 [shape = 'u32[]', space=smem, size = 0x4, offset = 0x4, fixed_abs, tag = 'smem constant byte address 0x4 - core index']
  #allocation1 [shape = 'u32[144,128]{1,0:T(1,128)}', space=vmem, size = 0x12000, scoped, tag = 'internal scratch']
  %s0 = inlined_call_operand.hbm [shape: f32[37,784], index: 0, kind: input, shape index: {}]
  %s1 = inlined_call_operand.hbm [shape: bf16[784,128], index: 1, kind: input, shape index: {}]
  %s2 = inlined_call_operand.vmem [shape: f32[1,128], index: 2, kind: input, shape index: {}]
  %s3 = inlined_call_operand.hbm [shape: bf16[128,128], index: 3, kind: input, shape index: {}]
  %s4 = inlined_call_operand.vmem [shape: f32[1,128], index: 4, kind: input, shape index: {}]
  %s5 = inlined_call_operand.hbm [shape: bf16[37,128], index: 5, kind: output, shape index: {}]
  %s6 = sld [smem:[#allocation0]]
  $region65: #{tpu_custom_call.1} parent=0
    _
  %s8 = ssub.s32 1, %s6
  %s9 = scalar_select 0, %s8, %s6
  $region1: #{tpu_custom_call.1} parent=0
    #allocation2 [shape = 'u8[172032]{0}', space=vmem, size = 0x2a000, scoped, tag = 'input window, operand 0']
    #allocation3 [shape = 's32[2]{0}', space=sflag, size = 0x8, scoped, tag = 'scoped memory for tpu_custom_call.1']
    #allocation4 [shape = 's32[2]{0}', space=sflag, size = 0x8, scoped, tag = 'scoped memory for tpu_custom_call.1']
    #allocation5 [shape = 'u8[200704]{0}', space=vmem, size = 0x31000, scoped, tag = 'input window, operand 1, single buffered']
    #allocation6 [shape = 's32[1]{0}', space=sflag, size = 0x4, scoped, tag = 'scoped memory for tpu_custom_call.1']
    #allocation7 [shape = 'u8[32768]{0}', space=vmem, size = 0x8000, scoped, tag = 'input window, operand 3, single buffered']
    #allocation8 [shape = 'u8[12288]{0}', space=vmem, size = 0x3000, scoped, tag = 'output window, operand 0']
    %10 = vsyncpa [#allocation3], 0
    %s11 = scalar_lea.sflag [#allocation3], 1
    %12 = vsyncpa %s11, 0
    %13 = vsyncpa [#allocation6], 0
    %14 = vsyncpa [#allocation4], 0
    %s15 = scalar_lea.sflag [#allocation4], 1
    %16 = vsyncpa %s15, 0
    loop: start=0, step=1, limit=4
    $region2: #{tpu_custom_call.1} parent=1 // loop_pre_header
      _
    $region3: #{tpu_custom_call.1} parent=1 // loop_header
      %s18 = sphi 0, %s22
      %p19 = scmp.ge.s32.totalorder %s18, 4
      %s28 = sphi 0, %s30
      %s31 = sphi 0, %s28
      %s32 = sphi 0, %s31
      %s48 = sphi 0, %s32
      %s52 = sphi 0, %s52
      %s54 = sphi 0, %s52
      %s55 = sphi 0, %s54
      %s69 = sphi 0, %s55
      %s73 = sphi 0, %s73
      %s75 = sphi 0, %s73
      %s76 = sphi 0, %s75
      %s90 = sphi 0, %s76
      %s94 = sphi 0, %s94
      %s96 = sphi 0, %s94
      %s97 = sphi 0, %s96
      %s111 = sphi 0, %s97
      %s115 = sphi 0, %s115
      %s117 = sphi 0, %s115
      %s118 = sphi 0, %s117
      %s132 = sphi 0, %s118
      %s138 = sphi 0, %s140
      %s141 = sphi 0, %s138
      %s142 = sphi 0, %s141
      %s158 = sphi 0, %s142
    $region4: #{tpu_custom_call.1} parent=1 // loop_header_branch
      %21 = sbr.rel (%p19) target = $region8
    $region5: #{tpu_custom_call.1} parent=1 // loop_body
      %s23 = ssub.s32 %s18, 1
      %s24 = ssub.s32 %s18, 2
      %s25 = sadd.s32 %s18, 1
      %s26 = ssub.s32 %s18, %s25
      %p27 = scmp.eq.s32.totalorder %s26, 0
      %s29 = sadd.s32 %s28, 1
      %s30 = scalar_select %p27, %s28, %s29
      %p33 = pneg %p27
      %p34 = scmp.eq.s32.totalorder %s18, 1
      %p35 = por %p33, %p34
      %p36 = scmp.ne.s32.totalorder %s28, %s31
      %p37 = scmp.eq.s32.totalorder %s18, 0
      %p38 = por %p36, %p37
      %p39 = scmp.ne.s32.totalorder %s28, %s31
      %p40 = scmp.eq.s32.totalorder %s23, 1
      %p41 = por %p39, %p40
      %p42 = scmp.ne.s32.totalorder %s31, %s32
      %p43 = scmp.eq.s32.totalorder %s23, 0
      %p44 = por %p42, %p43
      %p45 = scmp.ne.s32.totalorder %s31, %s32
      %p46 = scmp.eq.s32.totalorder %s24, 1
      %p47 = por %p45, %p46
      %p49 = scmp.ne.s32.totalorder %s32, %s48
      %p50 = scmp.eq.s32.totalorder %s24, 0
      %p51 = por %p49, %p50
      %s53 = sadd.s32 %s52, 1
      %p56 = scmp.eq.s32.totalorder %s18, 1
      %p57 = scmp.ne.s32.totalorder %s52, %s54
      %p58 = scmp.eq.s32.totalorder %s18, 0
      %p59 = por %p57, %p58
      %p60 = scmp.ne.s32.totalorder %s52, %s54
      %p61 = scmp.eq.s32.totalorder %s23, 1
      %p62 = por %p60, %p61
      %p63 = scmp.ne.s32.totalorder %s54, %s55
      %p64 = scmp.eq.s32.totalorder %s23, 0
      %p65 = por %p63, %p64
      %p66 = scmp.ne.s32.totalorder %s54, %s55
      %p67 = scmp.eq.s32.totalorder %s24, 1
      %p68 = por %p66, %p67
      %p70 = scmp.ne.s32.totalorder %s55, %s69
      %p71 = scmp.eq.s32.totalorder %s24, 0
      %p72 = por %p70, %p71
      %s74 = sadd.s32 %s73, 1
      %p77 = scmp.eq.s32.totalorder %s18, 1
      %p78 = scmp.ne.s32.totalorder %s73, %s75
      %p79 = scmp.eq.s32.totalorder %s18, 0
      %p80 = por %p78, %p79
      %p81 = scmp.ne.s32.totalorder %s73, %s75
      %p82 = scmp.eq.s32.totalorder %s23, 1
      %p83 = por %p81, %p82
      %p84 = scmp.ne.s32.totalorder %s75, %s76
      %p85 = scmp.eq.s32.totalorder %s23, 0
      %p86 = por %p84, %p85
      %p87 = scmp.ne.s32.totalorder %s75, %s76
      %p88 = scmp.eq.s32.totalorder %s24, 1
      %p89 = por %p87, %p88
      %p91 = scmp.ne.s32.totalorder %s76, %s90
      %p92 = scmp.eq.s32.totalorder %s24, 0
      %p93 = por %p91, %p92
      %s95 = sadd.s32 %s94, 1
      %p98 = scmp.eq.s32.totalorder %s18, 1
      %p99 = scmp.ne.s32.totalorder %s94, %s96
      %p100 = scmp.eq.s32.totalorder %s18, 0
      %p101 = por %p99, %p100
      %p102 = scmp.ne.s32.totalorder %s94, %s96
      %p103 = scmp.eq.s32.totalorder %s23, 1
      %p104 = por %p102, %p103
      %p105 = scmp.ne.s32.totalorder %s96, %s97
      %p106 = scmp.eq.s32.totalorder %s23, 0
      %p107 = por %p105, %p106
      %p108 = scmp.ne.s32.totalorder %s96, %s97
      %p109 = scmp.eq.s32.totalorder %s24, 1
      %p110 = por %p108, %p109
      %p112 = scmp.ne.s32.totalorder %s97, %s111
      %p113 = scmp.eq.s32.totalorder %s24, 0
      %p114 = por %p112, %p113
      %s116 = sadd.s32 %s115, 1
      %p119 = scmp.eq.s32.totalorder %s18, 1
      %p120 = scmp.ne.s32.totalorder %s115, %s117
      %p121 = scmp.eq.s32.totalorder %s18, 0
      %p122 = por %p120, %p121
      %p123 = scmp.ne.s32.totalorder %s115, %s117
      %p124 = scmp.eq.s32.totalorder %s23, 1
      %p125 = por %p123, %p124
      %p126 = scmp.ne.s32.totalorder %s117, %s118
      %p127 = scmp.eq.s32.totalorder %s23, 0
      %p128 = por %p126, %p127
      %p129 = scmp.ne.s32.totalorder %s117, %s118
      %p130 = scmp.eq.s32.totalorder %s24, 1
      %p131 = por %p129, %p130
      %p133 = scmp.ne.s32.totalorder %s118, %s132
      %p134 = scmp.eq.s32.totalorder %s24, 0
      %p135 = por %p133, %p134
      %s136 = ssub.s32 %s18, %s25
      %p137 = scmp.eq.s32.totalorder %s136, 0
      %s139 = sadd.s32 %s138, 1
      %s140 = scalar_select %p137, %s138, %s139
      %p143 = pneg %p137
      %p144 = scmp.eq.s32.totalorder %s18, 1
      %p145 = por %p143, %p144
      %p146 = scmp.ne.s32.totalorder %s138, %s141
      %p147 = scmp.eq.s32.totalorder %s18, 0
      %p148 = por %p146, %p147
      %p149 = scmp.ne.s32.totalorder %s138, %s141
      %p150 = scmp.eq.s32.totalorder %s23, 1
      %p151 = por %p149, %p150
      %p152 = scmp.ne.s32.totalorder %s141, %s142
      %p153 = scmp.eq.s32.totalorder %s23, 0
      %p154 = por %p152, %p153
      %p155 = scmp.ne.s32.totalorder %s141, %s142
      %p156 = scmp.eq.s32.totalorder %s24, 1
      %p157 = por %p155, %p156
      %p159 = scmp.ne.s32.totalorder %s142, %s158
      %p160 = scmp.eq.s32.totalorder %s24, 0
      %p161 = por %p159, %p160
      %p162 = scmp.le.s32.totalorder 1, %s18
      %p163 = scmp.lt.s32.totalorder %s18, 3
      %p164 = pnand %p162, %p163
      %p165 = pneg %p164
      // Predicated region
      $region9: #{tpu_custom_call.1} parent=5 // pred_check
        _
      $region10: #{tpu_custom_call.1} parent=5 // pred_check_branch
        %167 = sbr.rel (%p164) target = $region12
      $region11: #{tpu_custom_call.1} parent=5 // pred_region
        %s168 = ssub.s32 %s18, 1
        // Predicated region
        $region13: #{tpu_custom_call.1} parent=11 // pred_check
          %p169 = pneg %p65
        $region14: #{tpu_custom_call.1} parent=11 // pred_check_branch
          %171 = sbr.rel (%p169) target = $region16
        $region15: #{tpu_custom_call.1} parent=11 // pred_region
          %s173 = ssub.s32 6272, 6272
          %174 = vsyncadd [#allocation6], %s173
          %s175 = sshll.u32 [#allocation5], 4
          %s176 = int_to_ptr.vmem [resolvable:$true] %s175
          %181 = dma.hbm_to_vmem [thread:$0]  %s1, 6272, %s176, [#allocation6], 64, 64, 4
        $region16: #{tpu_custom_call.1} parent=11 // pred_fallthru
          _
        // Predicated region
        $region17: #{tpu_custom_call.1} parent=11 // pred_check
          %p182 = pneg %p86
        $region18: #{tpu_custom_call.1} parent=11 // pred_check_branch
          %184 = sbr.rel (%p182) target = $region20
        $region19: #{tpu_custom_call.1} parent=11 // pred_region
          _
        $region20: #{tpu_custom_call.1} parent=11 // pred_fallthru
          _
        // Predicated region
        $region21: #{tpu_custom_call.1} parent=11 // pred_check
          %p185 = pneg %p107
        $region22: #{tpu_custom_call.1} parent=11 // pred_check_branch
          %187 = sbr.rel (%p185) target = $region24
        $region23: #{tpu_custom_call.1} parent=11 // pred_region
          %s189 = ssub.s32 1024, 1024
          %190 = vsyncadd [#allocation6], %s189
          %s191 = sshll.u32 [#allocation7], 4
          %s192 = int_to_ptr.vmem [resolvable:$true] %s191
          %197 = dma.hbm_to_vmem [thread:$0]  %s3, 1024, %s192, [#allocation6], 64, 64, 4
        $region24: #{tpu_custom_call.1} parent=11 // pred_fallthru
          _
        // Predicated region
        $region25: #{tpu_custom_call.1} parent=11 // pred_check
          %p198 = pneg %p128
        $region26: #{tpu_custom_call.1} parent=11 // pred_check_branch
          %200 = sbr.rel (%p198) target = $region28
        $region27: #{tpu_custom_call.1} parent=11 // pred_region
          _
        $region28: #{tpu_custom_call.1} parent=11 // pred_fallthru
          _
      $region12: #{tpu_custom_call.1} parent=5 // pred_fallthru
        _
      %p201 = scmp.lt.s32.totalorder %s18, 2
      // Predicated region
      $region29: #{tpu_custom_call.1} parent=5 // pred_check
        %p202 = pneg %p201
      $region30: #{tpu_custom_call.1} parent=5 // pred_check_branch
        %204 = sbr.rel (%p202) target = $region32
      $region31: #{tpu_custom_call.1} parent=5 // pred_region
        // Predicated region
        $region33: #{tpu_custom_call.1} parent=31 // pred_check
          %p205 = pneg %p38
        $region34: #{tpu_custom_call.1} parent=31 // pred_check_branch
          %207 = sbr.rel (%p205) target = $region36
        $region35: #{tpu_custom_call.1} parent=31 // pred_region
          %s208 = sand.u32 %s28, 1
          %s209 = scalar_lea.sflag [#allocation3], %s208
          %s210 = sand.u32 %s28, 1
          %s211 = smul.addr %s210, 168
          %s212 = scalar_lea.vmem [#allocation2], %s211
          %s213 = smul.u32 3, %s18
          %s214 = ssub.s32 5, %s213
          %p215 = scmp.lt.s32.totalorder %s214, 3
          %s216 = scalar_select %p215, %s214, 3
          %s217 = smul.u32 128, %s216
          %s218 = smul.u32 %s217, 7
          %s220 = ssub.s32 2688, %s218
          %221 = vsyncadd %s209, %s220
          %p222 = scmp.ne.s32.totalorder 0, %s218
          %s223 = smul.addr %s213, 7
          %s224 = smul.addr %s223, 128
          %s225 = scalar_lea.hbm %s0, %s224
          %s226 = smul.u32 56, %s216
          %s227 = sshll.u32 %s212, 4
          %s228 = int_to_ptr.vmem [resolvable:$true] %s227
          %s229 = sshll.u32 %s226, 4
          %233 = dma.hbm_to_vmem [thread:$0]  (%p222), %s225, %s229, %s228, %s209, 896, 896, 56
        $region36: #{tpu_custom_call.1} parent=31 // pred_fallthru
          _
      $region32: #{tpu_custom_call.1} parent=5 // pred_fallthru
        _
      %p234 = scmp.le.s32.totalorder 1, %s18
      %p235 = scmp.lt.s32.totalorder %s18, 3
      %p236 = pnand %p234, %p235
      %p237 = pneg %p236
      // Predicated region
      $region37: #{tpu_custom_call.1} parent=5 // pred_check
        _
      $region38: #{tpu_custom_call.1} parent=5 // pred_check_branch
        %239 = sbr.rel (%p236) target = $region40
      $region39: #{tpu_custom_call.1} parent=5 // pred_region
        %s240 = ssub.s32 %s18, 1
        %s241 = sand.u32 %s31, 1
        %s242 = scalar_lea.sflag [#allocation3], %s241
        %s243 = sand.u32 %s31, 1
        %s244 = smul.addr %s243, 168
        %s245 = scalar_lea.vmem [#allocation2], %s244
        // Predicated region
        $region41: #{tpu_custom_call.1} parent=39 // pred_check
          %p246 = pneg %p44
        $region42: #{tpu_custom_call.1} parent=39 // pred_check_branch
          %248 = sbr.rel (%p246) target = $region44
        $region43: #{tpu_custom_call.1} parent=39 // pred_region
          %249 = dma.done %s242, 2688
        $region44: #{tpu_custom_call.1} parent=39 // pred_fallthru
          _
        // Predicated region
        $region45: #{tpu_custom_call.1} parent=39 // pred_check
          %p250 = pneg %p65
        $region46: #{tpu_custom_call.1} parent=39 // pred_check_branch
          %252 = sbr.rel (%p250) target = $region48
        $region47: #{tpu_custom_call.1} parent=39 // pred_region
          %253 = dma.done [#allocation6], 6272
        $region48: #{tpu_custom_call.1} parent=39 // pred_fallthru
          _
        // Predicated region
        $region49: #{tpu_custom_call.1} parent=39 // pred_check
          %p254 = pneg %p107
        $region50: #{tpu_custom_call.1} parent=39 // pred_check_branch
          %256 = sbr.rel (%p254) target = $region52
        $region51: #{tpu_custom_call.1} parent=39 // pred_region
          %257 = dma.done [#allocation6], 1024
        $region52: #{tpu_custom_call.1} parent=39 // pred_fallthru
          _
        %s258 = sand.u32 %s31, 1
        %s259 = scalar_lea.sflag [#allocation3], %s258
        %s260 = sand.u32 %s31, 1
        %s261 = smul.addr %s260, 168
        %s262 = scalar_lea.vmem [#allocation2], %s261
        %p263 = pneg %p44
        %p264 = pneg %p41
        %p265 = pneg %p65
        %p266 = pneg %p62
        %p267 = pneg %p86
        %p268 = pneg %p83
        %p269 = pneg %p107
        %p270 = pneg %p104
        %p271 = pneg %p128
        %p272 = pneg %p125
        %p273 = pneg %p154
        %p274 = pneg %p151
        %s275 = sand.u32 %s141, 1
        %s276 = scalar_lea.sflag [#allocation4], %s275
        %s277 = sand.u32 %s141, 1
        %s278 = smul.addr %s277, 12
        %s279 = scalar_lea.vmem [#allocation8], %s278
        %s280 = smul.u32 3, %s23
        %s281 = ssub.s32 5, %s280
        %p282 = scmp.lt.s32.totalorder %s281, 3
        %s283 = scalar_select %p282, %s281, 3
        %s284 = smul.u32 128, %s283
        %s285 = smul.u32 %s284, 7
        %s286 = smul.u32 3, %s23
        %s287 = ssub.s32 5, %s286
        %p288 = scmp.lt.s32.totalorder %s287, 3
        %s289 = scalar_select %p288, %s287, 3
        %s290 = smul.u32 64, %s289
        %v292 = vld [vmem:[%s245] sm:$0xff]
        %v293 = vld [vmem:[%s245 + $0x8] sm:$0xff]
        %v294 = vld [vmem:[%s245 + $0x10] sm:$0xff]
        %v295 = vld [vmem:[%s245 + $0x18] sm:$0xff]
        %v296 = vld [vmem:[%s245 + $0x20] sm:$0xff]
        %v297 = vld [vmem:[%s245 + $0x28] sm:$0xff]
        %v298 = vld [vmem:[%s245 + $0x30] sm:$0xff]
        %v299 = vld [vmem:[%s245 + $0x38] sm:$0xff]
        %v300 = vld [vmem:[%s245 + $0x40] sm:$0xff]
        %v301 = vld [vmem:[%s245 + $0x48] sm:$0xff]
        %v302 = vld [vmem:[%s245 + $0x50] sm:$0xff]
        %v303 = vld [vmem:[%s245 + $0x58] sm:$0xff]
        %v304 = vld [vmem:[%s245 + $0x60] sm:$0xff]
        %v305 = vld [vmem:[%s245 + $0x68] sm:$0xff]
        %v306 = vld [vmem:[%s245 + $0x70] sm:$0xff]
        %v307 = vld [vmem:[%s245 + $0x78] sm:$0xff]
        %v308 = vld [vmem:[%s245 + $0x80] sm:$0xff]
        %v309 = vld [vmem:[%s245 + $0x88] sm:$0xff]
        %v310 = vld [vmem:[%s245 + $0x90] sm:$0xff]
        %v311 = vld [vmem:[%s245 + $0x98] sm:$0xff]
        %v312 = vld [vmem:[%s245 + $0xa0] sm:$0xff]
        %v313 = vpack.c.bf16 %v299, %v292
        %v314 = vpack.c.bf16 %v300, %v293
        %v315 = vpack.c.bf16 %v301, %v294
        %v316 = vpack.c.bf16 %v302, %v295
        %v317 = vpack.c.bf16 %v303, %v296
        %v318 = vpack.c.bf16 %v304, %v297
        %v319 = vpack.c.bf16 %v305, %v298
        %v320 = vpack.c.bf16 %v306, %v306
        %v321 = vpack.c.bf16 %v307, %v307
        %v322 = vpack.c.bf16 %v308, %v308
        %v323 = vpack.c.bf16 %v309, %v309
        %v324 = vpack.c.bf16 %v310, %v310
        %v325 = vpack.c.bf16 %v311, %v311
        %v326 = vpack.c.bf16 %v312, %v312
        %v327 = vld [vmem:[#allocation5] sm:$0xf]
        %v328 = vld [vmem:[#allocation5 + $0x4] sm:$0xf]
        %v329 = vld [vmem:[#allocation5 + $0x8] sm:$0xf]
        %v330 = vld [vmem:[#allocation5 + $0xc] sm:$0xf]
        %v331 = vld [vmem:[#allocation5 + $0x10] sm:$0xf]
        %v332 = vld [vmem:[#allocation5 + $0x14] sm:$0xf]
        %v333 = vld [vmem:[#allocation5 + $0x18] sm:$0xf]
        %v334 = vld [vmem:[#allocation5 + $0x1c] sm:$0xf]
        %v335 = vld [vmem:[#allocation5 + $0x20] sm:$0xf]
        %v336 = vld [vmem:[#allocation5 + $0x24] sm:$0xf]
        %v337 = vld [vmem:[#allocation5 + $0x28] sm:$0xf]
        %v338 = vld [vmem:[#allocation5 + $0x2c] sm:$0xf]
        %v339 = vld [vmem:[#allocation5 + $0x30] sm:$0xf]
        %v340 = vld [vmem:[#allocation5 + $0x34] sm:$0xf]
        %v341 = vld [vmem:[#allocation5 + $0x38] sm:$0xf]
        %v342 = vld [vmem:[#allocation5 + $0x3c] sm:$0xf]
        %v343 = vld [vmem:[#allocation5 + $0x40] sm:$0xf]
        %v344 = vld [vmem:[#allocation5 + $0x44] sm:$0xf]
        %v345 = vld [vmem:[#allocation5 + $0x48] sm:$0xf]
        %v346 = vld [vmem:[#allocation5 + $0x4c] sm:$0xf]
        %v347 = vld [vmem:[#allocation5 + $0x50] sm:$0xf]
        %v348 = vld [vmem:[#allocation5 + $0x54] sm:$0xf]
        %v349 = vld [vmem:[#allocation5 + $0x58] sm:$0xf]
        %v350 = vld [vmem:[#allocation5 + $0x5c] sm:$0xf]
        %v351 = vld [vmem:[#allocation5 + $0x60] sm:$0xf]
        %v352 = vld [vmem:[#allocation5 + $0x64] sm:$0xf]
        %v353 = vld [vmem:[#allocation5 + $0x68] sm:$0xf]
        %v354 = vld [vmem:[#allocation5 + $0x6c] sm:$0xf]
        %v355 = vld [vmem:[#allocation5 + $0x70] sm:$0xf]
        %v356 = vld [vmem:[#allocation5 + $0x74] sm:$0xf]
        %v357 = vld [vmem:[#allocation5 + $0x78] sm:$0xf]
        %v358 = vld [vmem:[#allocation5 + $0x7c] sm:$0xf]
        %v359 = vld [vmem:[#allocation5 + $0x80] sm:$0xf]
        %v360 = vld [vmem:[#allocation5 + $0x84] sm:$0xf]
        %v361 = vld [vmem:[#allocation5 + $0x88] sm:$0xf]
        %v362 = vld [vmem:[#allocation5 + $0x8c] sm:$0xf]
        %v363 = vld [vmem:[#allocation5 + $0x90] sm:$0xf]
        %v364 = vld [vmem:[#allocation5 + $0x94] sm:$0xf]
        %v365 = vld [vmem:[#allocation5 + $0x98] sm:$0xf]
        %v366 = vld [vmem:[#allocation5 + $0x9c] sm:$0xf]
        %v367 = vld [vmem:[#allocation5 + $0xa0] sm:$0xf]
        %v368 = vld [vmem:[#allocation5 + $0xa4] sm:$0xf]
        %v369 = vld [vmem:[#allocation5 + $0xa8] sm:$0xf]
        %v370 = vld [vmem:[#allocation5 + $0xac] sm:$0xf]
        %v371 = vld [vmem:[#allocation5 + $0xb0] sm:$0xf]
        %v372 = vld [vmem:[#allocation5 + $0xb4] sm:$0xf]
        %v373 = vld [vmem:[#allocation5 + $0xb8] sm:$0xf]
        %v374 = vld [vmem:[#allocation5 + $0xbc] sm:$0xf]
        %v375 = vld [vmem:[#allocation5 + $0xc0] sm:$0xf]
        %v376 = vld [vmem:[#allocation5 + $0xc4] sm:$0xf]
        %v377 = vld [vmem:[#allocation5 + $0xc8] sm:$0xf]
        %v378 = vld [vmem:[#allocation5 + $0xcc] sm:$0xf]
        %v379 = vld [vmem:[#allocation5 + $0xd0] sm:$0xf]
        %v380 = vld [vmem:[#allocation5 + $0xd4] sm:$0xf]
        %v381 = vld [vmem:[#allocation5 + $0xd8] sm:$0xf]
        %v382 = vld [vmem:[#allocation5 + $0xdc] sm:$0xf]
        %v383 = vld [vmem:[#allocation5 + $0xe0] sm:$0xf]
        %v384 = vld [vmem:[#allocation5 + $0xe4] sm:$0xf]
        %v385 = vld [vmem:[#allocation5 + $0xe8] sm:$0xf]
        %v386 = vld [vmem:[#allocation5 + $0xec] sm:$0xf]
        %v387 = vld [vmem:[#allocation5 + $0xf0] sm:$0xf]
        %v388 = vld [vmem:[#allocation5 + $0xf4] sm:$0xf]
        %v389 = vld [vmem:[#allocation5 + $0xf8] sm:$0xf]
        %v390 = vld [vmem:[#allocation5 + $0xfc] sm:$0xf]
        %v391 = vld [vmem:[#allocation5 + $0x100] sm:$0xf]
        %v392 = vld [vmem:[#allocation5 + $0x104] sm:$0xf]
        %v393 = vld [vmem:[#allocation5 + $0x108] sm:$0xf]
        %v394 = vld [vmem:[#allocation5 + $0x10c] sm:$0xf]
        %v395 = vld [vmem:[#allocation5 + $0x110] sm:$0xf]
        %v396 = vld [vmem:[#allocation5 + $0x114] sm:$0xf]
        %v397 = vld [vmem:[#allocation5 + $0x118] sm:$0xf]
        %v398 = vld [vmem:[#allocation5 + $0x11c] sm:$0xf]
        %v399 = vld [vmem:[#allocation5 + $0x120] sm:$0xf]
        %v400 = vld [vmem:[#allocation5 + $0x124] sm:$0xf]
        %v401 = vld [vmem:[#allocation5 + $0x128] sm:$0xf]
        %v402 = vld [vmem:[#allocation5 + $0x12c] sm:$0xf]
        %v403 = vld [vmem:[#allocation5 + $0x130] sm:$0xf]
        %v404 = vld [vmem:[#allocation5 + $0x134] sm:$0xf]
        %v405 = vld [vmem:[#allocation5 + $0x138] sm:$0xf]
        %v406 = vld [vmem:[#allocation5 + $0x13c] sm:$0xf]
        %v407 = vld [vmem:[#allocation5 + $0x140] sm:$0xf]
        %v408 = vld [vmem:[#allocation5 + $0x144] sm:$0xf]
        %v409 = vld [vmem:[#allocation5 + $0x148] sm:$0xf]
        %v410 = vld [vmem:[#allocation5 + $0x14c] sm:$0xf]
        %v411 = vld [vmem:[#allocation5 + $0x150] sm:$0xf]
        %v412 = vld [vmem:[#allocation5 + $0x154] sm:$0xf]
        %v413 = vld [vmem:[#allocation5 + $0x158] sm:$0xf]
        %v414 = vld [vmem:[#allocation5 + $0x15c] sm:$0xf]
        %v415 = vld [vmem:[#allocation5 + $0x160] sm:$0xf]
        %v416 = vld [vmem:[#allocation5 + $0x164] sm:$0xf]
        %v417 = vld [vmem:[#allocation5 + $0x168] sm:$0xf]
        %v418 = vld [vmem:[#allocation5 + $0x16c] sm:$0xf]
        %v419 = vld [vmem:[#allocation5 + $0x170] sm:$0xf]
        %v420 = vld [vmem:[#allocation5 + $0x174] sm:$0xf]
        %v421 = vld [vmem:[#allocation5 + $0x178] sm:$0xf]
        %v422 = vld [vmem:[#allocation5 + $0x17c] sm:$0xf]
        %v423 = vld [vmem:[#allocation5 + $0x180] sm:$0xf]
        %v424 = vld [vmem:[#allocation5 + $0x184] sm:$0xf]
        %v425 = vld [vmem:[%s2] sm:$0x1]
        %v427 = vlaneseq
        %v428 = vshrl.u32 %v427, 7
        %v429 = vsub.s32 0, %v428
        %v430 = vrot.slane %v425, %v429
        %v530 = vunpack.c.l.b16 %v327
        %v531 = vunpack.c.l.b16 %v328
        %v532 = vunpack.c.l.b16 %v329
        %v533 = vunpack.c.l.b16 %v330
        %v534 = vunpack.c.l.b16 %v331
        %v535 = vunpack.c.l.b16 %v332
        %v536 = vunpack.c.l.b16 %v333
        %v537 = vunpack.c.l.b16 %v334
        %v538 = vunpack.c.l.b16 %v335
        %v539 = vunpack.c.l.b16 %v336
        %v540 = vunpack.c.l.b16 %v337
        %v541 = vunpack.c.l.b16 %v338
        %v542 = vunpack.c.l.b16 %v339
        %v543 = vunpack.c.l.b16 %v340
        %v544 = vunpack.c.l.b16 %v341
        %v545 = vunpack.c.l.b16 %v342
        %v546 = vunpack.c.l.b16 %v343
        %v547 = vunpack.c.l.b16 %v344
        %v548 = vunpack.c.l.b16 %v345
        %v549 = vunpack.c.l.b16 %v346
        %v550 = vunpack.c.l.b16 %v347
        %v551 = vunpack.c.l.b16 %v348
        %v552 = vunpack.c.l.b16 %v349
        %v553 = vunpack.c.l.b16 %v350
        %v554 = vunpack.c.l.b16 %v351
        %v555 = vunpack.c.l.b16 %v352
        %v556 = vunpack.c.l.b16 %v353
        %v557 = vunpack.c.l.b16 %v354
        %v558 = vunpack.c.l.b16 %v355
        %v559 = vunpack.c.l.b16 %v356
        %v560 = vunpack.c.l.b16 %v357
        %v561 = vunpack.c.l.b16 %v358
        %v562 = vunpack.c.l.b16 %v359
        %v563 = vunpack.c.l.b16 %v360
        %v564 = vunpack.c.l.b16 %v361
        %v565 = vunpack.c.l.b16 %v362
        %v566 = vunpack.c.l.b16 %v363
        %v567 = vunpack.c.l.b16 %v364
        %v568 = vunpack.c.l.b16 %v365
        %v569 = vunpack.c.l.b16 %v366
        %v570 = vunpack.c.l.b16 %v367
        %v571 = vunpack.c.l.b16 %v368
        %v572 = vunpack.c.l.b16 %v369
        %v573 = vunpack.c.l.b16 %v370
        %v574 = vunpack.c.l.b16 %v371
        %v575 = vunpack.c.l.b16 %v372
        %v576 = vunpack.c.l.b16 %v373
        %v577 = vunpack.c.l.b16 %v374
        %v578 = vunpack.c.l.b16 %v375
        %v579 = vunpack.c.l.b16 %v376
        %v580 = vunpack.c.l.b16 %v377
        %v581 = vunpack.c.l.b16 %v378
        %v582 = vunpack.c.l.b16 %v379
        %v583 = vunpack.c.l.b16 %v380
        %v584 = vunpack.c.l.b16 %v381
        %v585 = vunpack.c.l.b16 %v382
        %v586 = vunpack.c.l.b16 %v383
        %v587 = vunpack.c.l.b16 %v384
        %v588 = vunpack.c.l.b16 %v385
        %v589 = vunpack.c.l.b16 %v386
        %v590 = vunpack.c.l.b16 %v387
        %v591 = vunpack.c.l.b16 %v388
        %v592 = vunpack.c.l.b16 %v389
        %v593 = vunpack.c.l.b16 %v390
        %v594 = vunpack.c.l.b16 %v391
        %v595 = vunpack.c.l.b16 %v392
        %v596 = vunpack.c.l.b16 %v393
        %v597 = vunpack.c.l.b16 %v394
        %v598 = vunpack.c.l.b16 %v395
        %v599 = vunpack.c.l.b16 %v396
        %v600 = vunpack.c.l.b16 %v397
        %v601 = vunpack.c.l.b16 %v398
        %v602 = vunpack.c.l.b16 %v399
        %v603 = vunpack.c.l.b16 %v400
        %v604 = vunpack.c.l.b16 %v401
        %v605 = vunpack.c.l.b16 %v402
        %v606 = vunpack.c.l.b16 %v403
        %v607 = vunpack.c.l.b16 %v404
        %v608 = vunpack.c.l.b16 %v405
        %v609 = vunpack.c.l.b16 %v406
        %v610 = vunpack.c.l.b16 %v407
        %v611 = vunpack.c.l.b16 %v408
        %v612 = vunpack.c.l.b16 %v409
        %v613 = vunpack.c.l.b16 %v410
        %v614 = vunpack.c.l.b16 %v411
        %v615 = vunpack.c.l.b16 %v412
        %v616 = vunpack.c.l.b16 %v413
        %v617 = vunpack.c.l.b16 %v414
        %v618 = vunpack.c.l.b16 %v415
        %v619 = vunpack.c.l.b16 %v416
        %v620 = vunpack.c.l.b16 %v417
        %v621 = vunpack.c.l.b16 %v418
        %v622 = vunpack.c.l.b16 %v419
        %v623 = vunpack.c.l.b16 %v420
        %v624 = vunpack.c.l.b16 %v421
        %v625 = vunpack.c.l.b16 %v422
        %v626 = vunpack.c.l.b16 %v423
        %v627 = vunpack.c.l.b16 %v424
        %v628 = vpack.c.b16 %v531, %v530
        %v629 = vpack.c.b16 %v533, %v532
        %v630 = vpack.c.b16 %v535, %v534
        %v631 = vpack.c.b16 %v537, %v536
        %v632 = vpack.c.b16 %v539, %v538
        %v633 = vpack.c.b16 %v541, %v540
        %v634 = vpack.c.b16 %v543, %v542
        %v635 = vpack.c.b16 %v545, %v544
        %v636 = vpack.c.b16 %v547, %v546
        %v637 = vpack.c.b16 %v549, %v548
        %v638 = vpack.c.b16 %v551, %v550
        %v639 = vpack.c.b16 %v553, %v552
        %v640 = vpack.c.b16 %v555, %v554
        %v641 = vpack.c.b16 %v557, %v556
        %v642 = vpack.c.b16 %v559, %v558
        %v643 = vpack.c.b16 %v561, %v560
        %v644 = vpack.c.b16 %v563, %v562
        %v645 = vpack.c.b16 %v565, %v564
        %v646 = vpack.c.b16 %v567, %v566
        %v647 = vpack.c.b16 %v569, %v568
        %v648 = vpack.c.b16 %v571, %v570
        %v649 = vpack.c.b16 %v573, %v572
        %v650 = vpack.c.b16 %v575, %v574
        %v651 = vpack.c.b16 %v577, %v576
        %v652 = vpack.c.b16 %v579, %v578
        %v653 = vpack.c.b16 %v581, %v580
        %v654 = vpack.c.b16 %v583, %v582
        %v655 = vpack.c.b16 %v585, %v584
        %v656 = vpack.c.b16 %v587, %v586
        %v657 = vpack.c.b16 %v589, %v588
        %v658 = vpack.c.b16 %v591, %v590
        %v659 = vpack.c.b16 %v593, %v592
        %v660 = vpack.c.b16 %v595, %v594
        %v661 = vpack.c.b16 %v597, %v596
        %v662 = vpack.c.b16 %v599, %v598
        %v663 = vpack.c.b16 %v601, %v600
        %v664 = vpack.c.b16 %v603, %v602
        %v665 = vpack.c.b16 %v605, %v604
        %v666 = vpack.c.b16 %v607, %v606
        %v667 = vpack.c.b16 %v609, %v608
        %v668 = vpack.c.b16 %v611, %v610
        %v669 = vpack.c.b16 %v613, %v612
        %v670 = vpack.c.b16 %v615, %v614
        %v671 = vpack.c.b16 %v617, %v616
        %v672 = vpack.c.b16 %v619, %v618
        %v673 = vpack.c.b16 %v621, %v620
        %v674 = vpack.c.b16 %v623, %v622
        %v675 = vpack.c.b16 %v625, %v624
        %v676 = vpack.c.b16 %v627, %v626
        %vm726 = vcmask 130048
        %v728 = vsel %vm726, %v319, 0
        %v731 = vsel %vm726, %v326, 0
        %733 = vmatprep.subr.bf16.mxu0 0
        %734 = vmatpush1.bf16.msra.mxu0 %v628
        %735 = vmatprep.subr.bf16.mxu0 0
        %736 = vmatpush1.bf16.msra.mxu0 %v629
        %737 = vmatprep.subr.bf16.mxu0 0
        %738 = vmatpush1.bf16.msra.mxu0 %v630
        %739 = vmatprep.subr.bf16.mxu0 0
        %740 = vmatpush1.bf16.msra.mxu0 %v631
        %741 = vmatprep.subr.bf16.mxu0 0
        %742 = vmatpush1.bf16.msra.mxu0 %v632
        %743 = vmatprep.subr.bf16.mxu0 0
        %744 = vmatpush1.bf16.msra.mxu0 %v633
        %745 = vmatprep.subr.bf16.mxu0 0
        %746 = vmatpush1.bf16.msra.mxu0 %v634
        %747 = vmatprep.subr.bf16.mxu0 0
        %748 = vmatpush1.bf16.msra.mxu0 %v635
        %749 = vmatprep.subr.bf16.mxu0 0
        %750 = vmatpush1.bf16.msra.mxu0 %v636
        %751 = vmatprep.subr.bf16.mxu0 0
        %752 = vmatpush1.bf16.msra.mxu0 %v637
        %753 = vmatprep.subr.bf16.mxu0 0
        %754 = vmatpush1.bf16.msra.mxu0 %v638
        %755 = vmatprep.subr.bf16.mxu0 0
        %756 = vmatpush1.bf16.msra.mxu0 %v639
        %757 = vmatprep.subr.bf16.mxu0 0
        %758 = vmatpush1.bf16.msra.mxu0 %v640
        %759 = vmatprep.subr.bf16.mxu0 0
        %760 = vmatpush1.bf16.msra.mxu0 %v641
        %761 = vmatprep.subr.bf16.mxu0 0
        %762 = vmatpush1.bf16.msra.mxu0 %v642
        %763 = vmatprep.subr.bf16.mxu0 0
        %764 = vmatpush1.bf16.msra.mxu0 %v643
        %765 = vmatprep.mubr.bf16.mxu0 %v314
        %766 = vmatmul.mubr.bf16.gmra.mrb[0].mxu0 %v313
        %v767 = vpop.f32.mrb[0].mxu0
        %v768 = vadd.f32 %v430, %v767
        %v769 = vpop.f32.mrb[0].mxu0
        %v770 = vpop.f32.mrb[0].mxu0
        %v771 = vadd.f32 %v430, %v770
        %v772 = vpop.f32.mrb[0].mxu0
        %773 = vmatprep.mubr.bf16.mxu0 %v321
        %774 = vmatmul.mubr.bf16.gmra.mrb[0].mxu0 %v320
        %v775 = vpop.f32.mrb[0].mxu0
        %v776 = vadd.f32 %v430, %v775
        %v777 = vpop.f32.mrb[0].mxu0
        %v778 = vpop.f32.mrb[0].mxu0
        %v779 = vpop.f32.mrb[0].mxu0
        %780 = vdwg.mxu0
        %781 = vmatprep.subr.bf16.mxu0 0
        %782 = vmatpush1.bf16.msra.mxu0 %v644
        %783 = vmatprep.subr.bf16.mxu0 0
        %784 = vmatpush1.bf16.msra.mxu0 %v645
        %785 = vmatprep.subr.bf16.mxu0 0
        %786 = vmatpush1.bf16.msra.mxu0 %v646
        %787 = vmatprep.subr.bf16.mxu0 0
        %788 = vmatpush1.bf16.msra.mxu0 %v647
        %789 = vmatprep.subr.bf16.mxu0 0
        %790 = vmatpush1.bf16.msra.mxu0 %v648
        %791 = vmatprep.subr.bf16.mxu0 0
        %792 = vmatpush1.bf16.msra.mxu0 %v649
        %793 = vmatprep.subr.bf16.mxu0 0
        %794 = vmatpush1.bf16.msra.mxu0 %v650
        %795 = vmatprep.subr.bf16.mxu0 0
        %796 = vmatpush1.bf16.msra.mxu0 %v651
        %797 = vmatprep.subr.bf16.mxu0 0
        %798 = vmatpush1.bf16.msra.mxu0 %v652
        %799 = vmatprep.subr.bf16.mxu0 0
        %800 = vmatpush1.bf16.msra.mxu0 %v653
        %801 = vmatprep.subr.bf16.mxu0 0
        %802 = vmatpush1.bf16.msra.mxu0 %v654
        %803 = vmatprep.subr.bf16.mxu0 0
        %804 = vmatpush1.bf16.msra.mxu0 %v655
        %805 = vmatprep.subr.bf16.mxu0 0
        %806 = vmatpush1.bf16.msra.mxu0 %v656
        %807 = vmatprep.subr.bf16.mxu0 0
        %808 = vmatpush1.bf16.msra.mxu0 %v657
        %809 = vmatprep.subr.bf16.mxu0 0
        %810 = vmatpush1.bf16.msra.mxu0 %v658
        %811 = vmatprep.subr.bf16.mxu0 0
        %812 = vmatpush1.bf16.msra.mxu0 %v659
        %813 = vmatprep.mubr.bf16.mxu0 %v316
        %814 = vmatmul.mubr.bf16.gmra.mrb[0].mxu0 %v315
        %v815 = vpop.f32.mrb[0].mxu0
        %v816 = vadd.f32 %v768, %v815
        %v817 = vpop.f32.mrb[0].mxu0
        %v818 = vpop.f32.mrb[0].mxu0
        %v819 = vadd.f32 %v771, %v818
        %v820 = vpop.f32.mrb[0].mxu0
        %821 = vmatprep.mubr.bf16.mxu0 %v323
        %822 = vmatmul.mubr.bf16.gmra.mrb[0].mxu0 %v322
        %v823 = vpop.f32.mrb[0].mxu0
        %v824 = vadd.f32 %v776, %v823
        %v825 = vpop.f32.mrb[0].mxu0
        %v826 = vpop.f32.mrb[0].mxu0
        %v827 = vpop.f32.mrb[0].mxu0
        %828 = vdwg.mxu0
        %829 = vmatprep.subr.bf16.mxu0 0
        %830 = vmatpush1.bf16.msra.mxu0 %v660
        %831 = vmatprep.subr.bf16.mxu0 0
        %832 = vmatpush1.bf16.msra.mxu0 %v661
        %833 = vmatprep.subr.bf16.mxu0 0
        %834 = vmatpush1.bf16.msra.mxu0 %v662
        %835 = vmatprep.subr.bf16.mxu0 0
        %836 = vmatpush1.bf16.msra.mxu0 %v663
        %837 = vmatprep.subr.bf16.mxu0 0
        %838 = vmatpush1.bf16.msra.mxu0 %v664
        %839 = vmatprep.subr.bf16.mxu0 0
        %840 = vmatpush1.bf16.msra.mxu0 %v665
        %841 = vmatprep.subr.bf16.mxu0 0
        %842 = vmatpush1.bf16.msra.mxu0 %v666
        %843 = vmatprep.subr.bf16.mxu0 0
        %844 = vmatpush1.bf16.msra.mxu0 %v667
        %845 = vmatprep.subr.bf16.mxu0 0
        %846 = vmatpush1.bf16.msra.mxu0 %v668
        %847 = vmatprep.subr.bf16.mxu0 0
        %848 = vmatpush1.bf16.msra.mxu0 %v669
        %849 = vmatprep.subr.bf16.mxu0 0
        %850 = vmatpush1.bf16.msra.mxu0 %v670
        %851 = vmatprep.subr.bf16.mxu0 0
        %852 = vmatpush1.bf16.msra.mxu0 %v671
        %853 = vmatprep.subr.bf16.mxu0 0
        %854 = vmatpush1.bf16.msra.mxu0 %v672
        %855 = vmatprep.subr.bf16.mxu0 0
        %856 = vmatpush1.bf16.msra.mxu0 %v673
        %857 = vmatprep.subr.bf16.mxu0 0
        %858 = vmatpush1.bf16.msra.mxu0 %v674
        %859 = vmatprep.subr.bf16.mxu0 0
        %860 = vmatpush1.bf16.msra.mxu0 %v675
        %861 = vmatprep.mubr.bf16.mxu0 %v318
        %862 = vmatmul.mubr.bf16.gmra.mrb[0].mxu0 %v317
        %v863 = vpop.f32.mrb[0].mxu0
        %v864 = vadd.f32 %v816, %v863
        %v865 = vpop.f32.mrb[0].mxu0
        %v866 = vpop.f32.mrb[0].mxu0
        %v867 = vadd.f32 %v819, %v866
        %v868 = vpop.f32.mrb[0].mxu0
        %869 = vmatprep.mubr.bf16.mxu0 %v325
        %870 = vmatmul.mubr.bf16.gmra.mrb[0].mxu0 %v324
        %v871 = vpop.f32.mrb[0].mxu0
        %v872 = vadd.f32 %v824, %v871
        %v873 = vpop.f32.mrb[0].mxu0
        %v874 = vpop.f32.mrb[0].mxu0
        %v875 = vpop.f32.mrb[0].mxu0
        %876 = vdwg.mxu0
        %877 = vmatprep.subr.bf16.mxu0 0
        %878 = vmatpush1.bf16.msra.mxu0 %v676
        %879 = vmatprep.subr.bf16.mxu0 0
        %880 = vmatpush1.bf16.msra.mxu0 0
        %881 = vmatprep.subr.bf16.mxu0 0
        %882 = vmatpush1.bf16.msra.mxu0 0
        %883 = vmatprep.subr.bf16.mxu0 0
        %884 = vmatpush1.bf16.msra.mxu0 0
        %885 = vmatprep.subr.bf16.mxu0 0
        %886 = vmatpush1.bf16.msra.mxu0 0
        %887 = vmatprep.subr.bf16.mxu0 0
        %888 = vmatpush1.bf16.msra.mxu0 0
        %889 = vmatprep.subr.bf16.mxu0 0
        %890 = vmatpush1.bf16.msra.mxu0 0
        %891 = vmatprep.subr.bf16.mxu0 0
        %892 = vmatpush1.bf16.msra.mxu0 0
        %893 = vmatprep.subr.bf16.mxu0 0
        %894 = vmatpush1.bf16.msra.mxu0 0
        %895 = vmatprep.subr.bf16.mxu0 0
        %896 = vmatpush1.bf16.msra.mxu0 0
        %897 = vmatprep.subr.bf16.mxu0 0
        %898 = vmatpush1.bf16.msra.mxu0 0
        %899 = vmatprep.subr.bf16.mxu0 0
        %900 = vmatpush1.bf16.msra.mxu0 0
        %901 = vmatprep.subr.bf16.mxu0 0
        %902 = vmatpush1.bf16.msra.mxu0 0
        %903 = vmatprep.subr.bf16.mxu0 0
        %904 = vmatpush1.bf16.msra.mxu0 0
        %905 = vmatprep.subr.bf16.mxu0 0
        %906 = vmatpush1.bf16.msra.mxu0 0
        %907 = vmatprep.subr.bf16.mxu0 0
        %908 = vmatpush1.bf16.msra.mxu0 0
        %909 = vmatprep.mubr.bf16.mxu0 0
        %910 = vmatmul.mubr.bf16.gmra.mrb[0].mxu0 %v728
        %v911 = vpop.f32.mrb[0].mxu0
        %v912 = vadd.f32 %v864, %v911
        %v913 = vpop.f32.mrb[0].mxu0
        %v914 = vpop.f32.mrb[0].mxu0
        %v915 = vadd.f32 %v867, %v914
        %v916 = vpop.f32.mrb[0].mxu0
        %917 = vmatprep.mubr.bf16.mxu0 0
        %918 = vmatmul.mubr.bf16.gmra.mrb[0].mxu0 %v731
        %v919 = vpop.f32.mrb[0].mxu0
        %v920 = vadd.f32 %v872, %v919
        %v921 = vpop.f32.mrb[0].mxu0
        %v922 = vpop.f32.mrb[0].mxu0
        %v923 = vpop.f32.mrb[0].mxu0
        %924 = vdwg.mxu0
        %v925 = vmax.f32 %v912, 0.0
        %v926 = vmax.f32 %v915, 0.0
        %v927 = vmax.f32 %v920, 0.0
        %v928 = vpack.c.bf16 %v926, %v925
        %v929 = vpack.c.bf16 %v927, %v927
        %v930 = vld [vmem:[#allocation7] sm:$0xf]
        %v931 = vld [vmem:[#allocation7 + $0x4] sm:$0xf]
        %v932 = vld [vmem:[#allocation7 + $0x8] sm:$0xf]
        %v933 = vld [vmem:[#allocation7 + $0xc] sm:$0xf]
        %v934 = vld [vmem:[#allocation7 + $0x10] sm:$0xf]
        %v935 = vld [vmem:[#allocation7 + $0x14] sm:$0xf]
        %v936 = vld [vmem:[#allocation7 + $0x18] sm:$0xf]
        %v937 = vld [vmem:[#allocation7 + $0x1c] sm:$0xf]
        %v938 = vld [vmem:[#allocation7 + $0x20] sm:$0xf]
        %v939 = vld [vmem:[#allocation7 + $0x24] sm:$0xf]
        %v940 = vld [vmem:[#allocation7 + $0x28] sm:$0xf]
        %v941 = vld [vmem:[#allocation7 + $0x2c] sm:$0xf]
        %v942 = vld [vmem:[#allocation7 + $0x30] sm:$0xf]
        %v943 = vld [vmem:[#allocation7 + $0x34] sm:$0xf]
        %v944 = vld [vmem:[#allocation7 + $0x38] sm:$0xf]
        %v945 = vld [vmem:[#allocation7 + $0x3c] sm:$0xf]
        %v946 = vld [vmem:[%s4] sm:$0x1]
        %v948 = vlaneseq
        %v949 = vshrl.u32 %v948, 7
        %v950 = vsub.s32 0, %v949
        %v951 = vrot.slane %v946, %v950
        %v969 = vunpack.c.l.b16 %v930
        %v970 = vunpack.c.l.b16 %v931
        %v971 = vunpack.c.l.b16 %v932
        %v972 = vunpack.c.l.b16 %v933
        %v973 = vunpack.c.l.b16 %v934
        %v974 = vunpack.c.l.b16 %v935
        %v975 = vunpack.c.l.b16 %v936
        %v976 = vunpack.c.l.b16 %v937
        %v977 = vunpack.c.l.b16 %v938
        %v978 = vunpack.c.l.b16 %v939
        %v979 = vunpack.c.l.b16 %v940
        %v980 = vunpack.c.l.b16 %v941
        %v981 = vunpack.c.l.b16 %v942
        %v982 = vunpack.c.l.b16 %v943
        %v983 = vunpack.c.l.b16 %v944
        %v984 = vunpack.c.l.b16 %v945
        %v985 = vpack.c.b16 %v970, %v969
        %v986 = vpack.c.b16 %v972, %v971
        %v987 = vpack.c.b16 %v974, %v973
        %v988 = vpack.c.b16 %v976, %v975
        %v989 = vpack.c.b16 %v978, %v977
        %v990 = vpack.c.b16 %v980, %v979
        %v991 = vpack.c.b16 %v982, %v981
        %v992 = vpack.c.b16 %v984, %v983
        %1001 = vmatprep.subr.bf16.mxu0 0
        %1002 = vmatpush1.bf16.msra.mxu0 %v985
        %1003 = vmatprep.subr.bf16.mxu0 0
        %1004 = vmatpush1.bf16.msra.mxu0 %v986
        %1005 = vmatprep.subr.bf16.mxu0 0
        %1006 = vmatpush1.bf16.msra.mxu0 %v987
        %1007 = vmatprep.subr.bf16.mxu0 0
        %1008 = vmatpush1.bf16.msra.mxu0 %v988
        %1009 = vmatprep.subr.bf16.mxu0 0
        %1010 = vmatpush1.bf16.msra.mxu0 %v989
        %1011 = vmatprep.subr.bf16.mxu0 0
        %1012 = vmatpush1.bf16.msra.mxu0 %v990
        %1013 = vmatprep.subr.bf16.mxu0 0
        %1014 = vmatpush1.bf16.msra.mxu0 %v991
        %1015 = vmatprep.subr.bf16.mxu0 0
        %1016 = vmatpush1.bf16.msra.mxu0 %v992
        %1017 = vmatprep.subr.bf16.mxu0 0
        %1018 = vmatpush1.bf16.msra.mxu0 0
        %1019 = vmatprep.subr.bf16.mxu0 0
        %1020 = vmatpush1.bf16.msra.mxu0 0
        %1021 = vmatprep.subr.bf16.mxu0 0
        %1022 = vmatpush1.bf16.msra.mxu0 0
        %1023 = vmatprep.subr.bf16.mxu0 0
        %1024 = vmatpush1.bf16.msra.mxu0 0
        %1025 = vmatprep.subr.bf16.mxu0 0
        %1026 = vmatpush1.bf16.msra.mxu0 0
        %1027 = vmatprep.subr.bf16.mxu0 0
        %1028 = vmatpush1.bf16.msra.mxu0 0
        %1029 = vmatprep.subr.bf16.mxu0 0
        %1030 = vmatpush1.bf16.msra.mxu0 0
        %1031 = vmatprep.subr.bf16.mxu0 0
        %1032 = vmatpush1.bf16.msra.mxu0 0
        %1033 = vmatprep.mubr.bf16.mxu0 0
        %1034 = vmatmul.mubr.bf16.gmra.mrb[0].mxu0 %v928
        %v1035 = vpop.f32.mrb[0].mxu0
        %v1036 = vadd.f32 %v951, %v1035
        %v1037 = vpop.f32.mrb[0].mxu0
        %v1038 = vpop.f32.mrb[0].mxu0
        %v1039 = vadd.f32 %v951, %v1038
        %v1040 = vpop.f32.mrb[0].mxu0
        %1041 = vmatprep.mubr.bf16.mxu0 0
        %1042 = vmatmul.mubr.bf16.gmra.mrb[0].mxu0 %v929
        %v1043 = vpop.f32.mrb[0].mxu0
        %v1044 = vadd.f32 %v951, %v1043
        %v1045 = vpop.f32.mrb[0].mxu0
        %v1046 = vpop.f32.mrb[0].mxu0
        %v1047 = vpop.f32.mrb[0].mxu0
        %1048 = vdwg.mxu0
        %v1049 = vpack.c.bf16 %v1039, %v1036
        %v1050 = vpack.c.bf16 %v1044, %v1044
        %v1053 = vunpack.c.l.b16 %v1049
        %v1054 = vunpack.c.h.b16 %v1049
        %v1055 = vunpack.c.l.b16 %v1050
        %v1056 = vpack.c.b16 %v1053, %v1053
        %v1057 = vpack.c.b16 %v1054, %v1054
        %v1058 = vpack.c.b16 %v1055, %v1055
        %1062 = vst [vmem:[%s279] sm:$0xf] %v1056
        %1063 = vst [vmem:[%s279 + $0x4] sm:$0xf] %v1057
        %1064 = vst [vmem:[%s279 + $0x8] sm:$0xf] %v1058
        %s1065 = sand.u32 %s141, 1
        %s1066 = scalar_lea.sflag [#allocation4], %s1065
        %s1067 = sand.u32 %s141, 1
        %s1068 = smul.addr %s1067, 12
        %s1069 = scalar_lea.vmem [#allocation8], %s1068
        // Predicated region
        $region53: #{tpu_custom_call.1} parent=39 // pred_check
          %p1070 = pneg %p151
        $region54: #{tpu_custom_call.1} parent=39 // pred_check_branch
          %1072 = sbr.rel (%p1070) target = $region56
        $region55: #{tpu_custom_call.1} parent=39 // pred_region
          %s1073 = smul.u32 3, %s23
          %s1074 = ssub.s32 5, %s1073
          %p1075 = scmp.lt.s32.totalorder %s1074, 3
          %s1076 = scalar_select %p1075, %s1074, 3
          %s1077 = smul.u32 64, %s1076
          %s1079 = ssub.s32 192, %s1077
          %1080 = vsyncadd %s1066, %s1079
          %p1081 = scmp.ne.s32.totalorder 0, %s1077
          %s1082 = smul.addr %s1073, 64
          %s1083 = scalar_lea.hbm %s5, %s1082
          %s1084 = smul.u32 4, %s1076
          %s1085 = sshll.u32 %s1069, 4
          %s1086 = int_to_ptr.vmem [resolvable:$true] %s1085
          %s1087 = sshll.u32 %s1084, 4
          %1091 = dma.vmem_to_hbm [thread:$0]  (%p1081), %s1086, %s1087, %s1083, %s1066, 64, 64, 4
        $region56: #{tpu_custom_call.1} parent=39 // pred_fallthru
          _
      $region40: #{tpu_custom_call.1} parent=5 // pred_fallthru
        _
      %p1092 = scmp.le.s32.totalorder 2, %s18
      // Predicated region
      $region57: #{tpu_custom_call.1} parent=5 // pred_check
        %p1093 = pneg %p1092
      $region58: #{tpu_custom_call.1} parent=5 // pred_check_branch
        %1095 = sbr.rel (%p1093) target = $region60
      $region59: #{tpu_custom_call.1} parent=5 // pred_region
        %s1096 = ssub.s32 %s18, 2
        // Predicated region
        $region61: #{tpu_custom_call.1} parent=59 // pred_check
          %p1097 = pneg %p157
        $region62: #{tpu_custom_call.1} parent=59 // pred_check_branch
          %1099 = sbr.rel (%p1097) target = $region64
        $region63: #{tpu_custom_call.1} parent=59 // pred_region
          %s1100 = sand.u32 %s142, 1
          %s1101 = scalar_lea.sflag [#allocation4], %s1100
          %s1102 = sand.u32 %s142, 1
          %s1103 = smul.addr %s1102, 12
          %s1104 = scalar_lea.vmem [#allocation8], %s1103
          %1105 = dma.done %s1101, 192
        $region64: #{tpu_custom_call.1} parent=59 // pred_fallthru
          _
      $region60: #{tpu_custom_call.1} parent=5 // pred_fallthru
        _
    $region6: #{tpu_custom_call.1} parent=1 // loop_footer
      %s22 = sadd.s32 1, %s18
    $region7: #{tpu_custom_call.1} parent=1 // loop_footer_branch
      %17 = sbr.rel target = $region3
    $region8: #{tpu_custom_call.1} parent=1 // loop_exit
      _
    %1106 = vsyncpa [#allocation3], 1
    %s1107 = scalar_lea.sflag [#allocation3], 1
    %1108 = vsyncpa %s1107, 1
    %1109 = vsyncpa [#allocation6], 1
    %1110 = vsyncpa [#allocation4], 1
    %s1111 = scalar_lea.sflag [#allocation4], 1
    %1112 = vsyncpa %s1111, 1

</llo_original>
